<compile_context>
chip_gen: v7x
topology: tpu7x:2x2x1
jax: 0.10.0
libtpu: 0.0.40
codegen_flags: <defaults>
</compile_context>

<pallas_src>
import functools

import jax
import jax.numpy as jnp
from jax import lax
from jax.experimental import pallas as pl
from jax.experimental.pallas import tpu as pltpu

LANES = 128
TILE_ROWS = 2048   # 2048 x 128 x 4 B = 1 MiB per f32 input block


def _num_tensorcores() -> int:
    """2 on megacore chips (v4 / v5p / v7x), else 1. Perf-only; correctness
    does not depend on this being right."""
    try:
        kind = jax.devices()[0].device_kind.lower()
    except Exception:
        return 1
    if any(tag in kind for tag in ("v4", "v5p", "v7")):
        return 2
    return 1


def _dice_partial_kernel(yp_ref, yt_ref, out_ref, acc_i_ref, acc_u_ref, *,
                         steps_per_core, num_clean_blocks, total_grid_blocks,
                         full_rows, rem):
    """Streams (tile_rows, 128) blocks, accumulating (8,128) per-lane partials.

    acc_i accumulates sigmoid(pred) * true, acc_u accumulates sigmoid(pred) + true.
    Interior blocks take an unmasked fast path; boundary / clamped-duplicate
    blocks (statically known) mask out invalid elements.  At the last streaming
    step the accumulators are reduced over sublanes and written as (1, 128)
    rows into this core's output block.
    """
    tile_rows, lanes = yp_ref.shape
    c = pl.program_id(0)           # core (parallel) axis
    i = pl.program_id(1)           # streaming (arbitrary) axis
    steps = pl.num_programs(1)

    @pl.when(i == 0)
    def _init():
        acc_i_ref[...] = jnp.zeros_like(acc_i_ref)
        acc_u_ref[...] = jnp.zeros_like(acc_u_ref)

    block_idx = c * steps_per_core + i

    def _sigmoid(x):
        # Exact sigmoid via tanh (EUP slot) instead of exp + full-precision divide.
        return 0.5 * (jnp.tanh(0.5 * x) + 1.0)

    def _accumulate(p, t):
        pt = p * t
        pu = p + t
        if tile_rows % 8 == 0:
            # (tile,128) -> (tile//8, 8, 128): pure VALU vreg adds over axis 0.
            acc_i_ref[...] += jnp.sum(pt.reshape(tile_rows // 8, 8, lanes), axis=0)
            acc_u_ref[...] += jnp.sum(pu.reshape(tile_rows // 8, 8, lanes), axis=0)
        else:
            # Tiny single-block inputs only; reduce fully and use row 0.
            acc_i_ref[0:1, :] += jnp.sum(pt, axis=0, keepdims=True)
            acc_u_ref[0:1, :] += jnp.sum(pu, axis=0, keepdims=True)

    def _interior():
        p = _sigmoid(yp_ref[...].astype(jnp.float32))
        t = yt_ref[...].astype(jnp.float32)
        _accumulate(p, t)

    def _boundary():
        # Element-level validity mask (only emitted for the statically-known
        # boundary / clamped-duplicate blocks).  jnp.where is a true select,
        # so garbage in Pallas' unspecified block padding never leaks in.
        row0 = block_idx * tile_rows
        row_ids = row0 + lax.broadcasted_iota(jnp.int32, (tile_rows, lanes), 0)
        lane_ids = lax.broadcasted_iota(jnp.int32, (tile_rows, lanes), 1)
        mask = (row_ids < full_rows) | ((row_ids == full_rows) & (lane_ids < rem))
        p = jnp.where(mask, _sigmoid(yp_ref[...].astype(jnp.float32)), 0.0)
        t = jnp.where(mask, yt_ref[...].astype(jnp.float32), 0.0)
        _accumulate(p, t)

    need_fast = num_clean_blocks > 0
    need_masked = num_clean_blocks < total_grid_blocks
    if need_fast and need_masked:
        pl.when(block_idx < num_clean_blocks)(_interior)
        pl.when(block_idx >= num_clean_blocks)(_boundary)
    elif need_fast:
        _interior()
    else:
        _boundary()

    @pl.when(i == steps - 1)
    def _finalize():
        out_ref[0, 0:1, :] = jnp.sum(acc_i_ref[...], axis=0, keepdims=True)
        out_ref[0, 1:2, :] = jnp.sum(acc_u_ref[...], axis=0, keepdims=True)


@functools.partial(jax.jit, static_argnames=("smooth",))
def dice_loss(y_pred, y_true, smooth=1.0):
    # Flatten (matches y_pred.view(-1) / y_true.view(-1)); keep native dtypes
    # over the DMA (bool -> int8 only, cast to f32 inside the kernel).
    yp = jnp.reshape(y_pred, (-1,))
    yt = jnp.reshape(y_true, (-1,))
    if yt.dtype == jnp.bool_:
        yt = yt.astype(jnp.int8)
    n = yp.shape[0]

    # Lane-align: tiny pad (< 128 elems, value irrelevant — masked in kernel)
    # only when numel is not already a multiple of 128.
    rows = pl.cdiv(n, LANES)
    pad = rows * LANES - n
    if pad:
        yp = jnp.pad(yp, (0, pad))
        yt = jnp.pad(yt, (0, pad))
    yp2 = yp.reshape(rows, LANES)
    yt2 = yt.reshape(rows, LANES)

    tile_rows = TILE_ROWS if rows >= TILE_ROWS else rows
    num_blocks = pl.cdiv(rows, tile_rows)

    num_cores = _num_tensorcores() if num_blocks > 1 else 1
    steps_per_core = pl.cdiv(num_blocks, num_cores)
    total_grid_blocks = num_cores * steps_per_core       # includes clamped dupes

    full_rows = n // LANES                                # fully-valid rows
    rem = n - full_rows * LANES                           # valid lanes in next row
    num_clean_blocks = full_rows // tile_rows             # blocks needing no mask

    kernel = functools.partial(
        _dice_partial_kernel,
        steps_per_core=steps_per_core,
        num_clean_blocks=num_clean_blocks,
        total_grid_blocks=total_grid_blocks,
        full_rows=full_rows,
        rem=rem,
    )

    def in_map(c, i):
        # Clamp so the DMA never addresses past the array; clamped duplicate
        # blocks are statically known and zeroed by the masked branch.
        return (jnp.minimum(c * steps_per_core + i, num_blocks - 1), 0)

    def out_map(c, i):
        return (c, 0, 0)

    partials = pl.pallas_call(
        kernel,
        out_shape=jax.ShapeDtypeStruct((num_cores, 2, LANES), jnp.float32),
        grid_spec=pltpu.PrefetchScalarGridSpec(
            num_scalar_prefetch=0,
            grid=(num_cores, steps_per_core),
            in_specs=[
                pl.BlockSpec((tile_rows, LANES), in_map),
                pl.BlockSpec((tile_rows, LANES), in_map),
            ],
            out_specs=pl.BlockSpec((1, 2, LANES), out_map),
            scratch_shapes=[
                pltpu.VMEM((8, LANES), jnp.float32),
                pltpu.VMEM((8, LANES), jnp.float32),
            ],
        ),
        compiler_params=pltpu.CompilerParams(
            dimension_semantics=("parallel", "arbitrary"),
        ),
    )(yp2, yt2)

    intersection = jnp.sum(partials[:, 0, :])
    union = jnp.sum(partials[:, 1, :])
    dice_score = (2.0 * intersection + smooth) / (union + smooth)
    return 1.0 - dice_score


def dice_loss_ref(y_pred, y_true, smooth=1.0):
    p = jax.nn.sigmoid(y_pred.astype(jnp.float32)).reshape(-1)
    t = y_true.astype(jnp.float32).reshape(-1)
    inter = jnp.sum(p * t)
    union = jnp.sum(p) + jnp.sum(t)
    return 1.0 - (2.0 * inter + smooth) / (union + smooth)


if __name__ == "__main__":
    key = jax.random.PRNGKey(0)
    k1, k2 = jax.random.split(key)

    # NCHW like the PyTorch usage: (batch=2, channels=4, H=16, W=16)
    y_pred = jax.random.normal(k1, (2, 4, 16, 16), dtype=jnp.float32)
    y_true = (jax.random.uniform(k2, (2, 4, 16, 16)) > 0.5).astype(jnp.float32)

    loss = dice_loss(y_pred, y_true, smooth=1.0)
    loss = jax.block_until_ready(loss)

    ref = dice_loss_ref(y_pred, y_true, smooth=1.0)
    assert jnp.allclose(loss, ref, atol=1e-5, rtol=1e-5), (loss, ref)

    print("KERNEL_OK")
</pallas_src>

<mosaic_0001>
module attributes {stable_mosaic.version = 11 : i64} {
  func.func @_dice_partial_kernel(%arg0: i32, %arg1: i32, %arg2: memref<16x128xf32, #tpu.memory_space<vmem>>, %arg3: memref<16x128xf32, #tpu.memory_space<vmem>>, %arg4: memref<1x2x128xf32, #tpu.memory_space<vmem>>, %arg5: memref<8x128xf32, #tpu.memory_space<vmem>>, %arg6: memref<8x128xf32, #tpu.memory_space<vmem>>) attributes {dimension_semantics = [#tpu.dimension_semantics<parallel>, #tpu.dimension_semantics<arbitrary>], iteration_bounds = array<i64: 1, 1>, scalar_prefetch = 0 : i64, scratch_operands = 2 : i64, tpu.core_type = #tpu.core_type<tc>, window_params = [{transform_indices = @transform_0, window_bounds = array<i64: 16, 128>}, {transform_indices = @transform_1, window_bounds = array<i64: 16, 128>}, {transform_indices = @transform_2, window_bounds = array<i64: 1, 2, 128>}]} {
    %c0_i32 = arith.constant 0 : i32
    %0 = arith.cmpi eq, %arg1, %c0_i32 : i32
    %1 = arith.extui %0 : i1 to i32
    %c0_i32_0 = arith.constant 0 : i32
    %2 = arith.cmpi ne, %1, %c0_i32_0 : i32
    scf.if %2 {
      %cst_18 = arith.constant 0.000000e+00 : f32
      %27 = vector.broadcast %cst_18 : f32 to vector<8x128xf32>
      %c0_19 = arith.constant 0 : index
      %c0_20 = arith.constant 0 : index
      %28 = vector.load %arg5[%c0_19, %c0_20] : memref<8x128xf32, #tpu.memory_space<vmem>>, vector<8x128xf32>
      tpu.vector_store %arg5[%c0_19, %c0_20], %27 {strides = array<i32>} : memref<8x128xf32, #tpu.memory_space<vmem>>, vector<8x128xf32>,
      %cst_21 = arith.constant 0.000000e+00 : f32
      %29 = vector.broadcast %cst_21 : f32 to vector<8x128xf32>
      %c0_22 = arith.constant 0 : index
      %c0_23 = arith.constant 0 : index
      %30 = vector.load %arg6[%c0_22, %c0_23] : memref<8x128xf32, #tpu.memory_space<vmem>>, vector<8x128xf32>
      tpu.vector_store %arg6[%c0_22, %c0_23], %29 {strides = array<i32>} : memref<8x128xf32, #tpu.memory_space<vmem>>, vector<8x128xf32>,
    } else {
    }
    %c0 = arith.constant 0 : index
    %c0_1 = arith.constant 0 : index
    %3 = vector.load %arg2[%c0, %c0_1] : memref<16x128xf32, #tpu.memory_space<vmem>>, vector<16x128xf32>
    %cst = arith.constant 5.000000e-01 : f32
    %4 = vector.broadcast %cst : f32 to vector<16x128xf32>
    %5 = arith.mulf %4, %3 : vector<16x128xf32>
    %6 = math.tanh %5 : vector<16x128xf32>
    %cst_2 = arith.constant 1.000000e+00 : f32
    %7 = vector.broadcast %cst_2 : f32 to vector<16x128xf32>
    %8 = arith.addf %6, %7 : vector<16x128xf32>
    %cst_3 = arith.constant 5.000000e-01 : f32
    %9 = vector.broadcast %cst_3 : f32 to vector<16x128xf32>
    %10 = arith.mulf %9, %8 : vector<16x128xf32>
    %c0_4 = arith.constant 0 : index
    %c0_5 = arith.constant 0 : index
    %11 = vector.load %arg3[%c0_4, %c0_5] : memref<16x128xf32, #tpu.memory_space<vmem>>, vector<16x128xf32>
    %12 = arith.mulf %10, %11 : vector<16x128xf32>
    %13 = arith.addf %10, %11 : vector<16x128xf32>
    %c0_6 = arith.constant 0 : index
    %c0_7 = arith.constant 0 : index
    %14 = vector.load %arg5[%c0_6, %c0_7] : memref<8x128xf32, #tpu.memory_space<vmem>>, vector<8x128xf32>
    %15 = vector.shape_cast %12 : vector<16x128xf32> to vector<2x8x128xf32>
    %cst_8 = arith.constant dense<0.000000e+00> : vector<8x128xf32>
    %16 = vector.multi_reduction <add>, %15, %cst_8 [0] : vector<2x8x128xf32> to vector<8x128xf32>
    %17 = arith.addf %14, %16 : vector<8x128xf32>
    %c0_9 = arith.constant 0 : index
    %c0_10 = arith.constant 0 : index
    %18 = vector.load %arg5[%c0_9, %c0_10] : memref<8x128xf32, #tpu.memory_space<vmem>>, vector<8x128xf32>
    tpu.vector_store %arg5[%c0_9, %c0_10], %17 {strides = array<i32>} : memref<8x128xf32, #tpu.memory_space<vmem>>, vector<8x128xf32>,
    %c0_11 = arith.constant 0 : index
    %c0_12 = arith.constant 0 : index
    %19 = vector.load %arg6[%c0_11, %c0_12] : memref<8x128xf32, #tpu.memory_space<vmem>>, vector<8x128xf32>
    %20 = vector.shape_cast %13 : vector<16x128xf32> to vector<2x8x128xf32>
    %cst_13 = arith.constant dense<0.000000e+00> : vector<8x128xf32>
    %21 = vector.multi_reduction <add>, %20, %cst_13 [0] : vector<2x8x128xf32> to vector<8x128xf32>
    %22 = arith.addf %19, %21 : vector<8x128xf32>
    %c0_14 = arith.constant 0 : index
    %c0_15 = arith.constant 0 : index
    %23 = vector.load %arg6[%c0_14, %c0_15] : memref<8x128xf32, #tpu.memory_space<vmem>>, vector<8x128xf32>
    tpu.vector_store %arg6[%c0_14, %c0_15], %22 {strides = array<i32>} : memref<8x128xf32, #tpu.memory_space<vmem>>, vector<8x128xf32>,
    %c0_i32_16 = arith.constant 0 : i32
    %24 = arith.cmpi eq, %arg1, %c0_i32_16 : i32
    %25 = arith.extui %24 : i1 to i32
    %c0_i32_17 = arith.constant 0 : i32
    %26 = arith.cmpi ne, %25, %c0_i32_17 : i32
    scf.if %26 {
      %c0_18 = arith.constant 0 : index
      %c0_19 = arith.constant 0 : index
      %27 = vector.load %arg5[%c0_18, %c0_19] : memref<8x128xf32, #tpu.memory_space<vmem>>, vector<8x128xf32>
      %cst_20 = arith.constant dense<0.000000e+00> : vector<128xf32>
      %28 = vector.multi_reduction <add>, %27, %cst_20 [0] : vector<8x128xf32> to vector<128xf32>
      %29 = vector.shape_cast %28 : vector<128xf32> to vector<1x128xf32>
      %c0_21 = arith.constant 0 : index
      %c0_22 = arith.constant 0 : index
      %c0_23 = arith.constant 0 : index
      %30 = vector.load %arg4[%c0_21, %c0_22, %c0_23] : memref<1x2x128xf32, #tpu.memory_space<vmem>>, vector<1x1x128xf32>
      %31 = vector.shape_cast %30 : vector<1x1x128xf32> to vector<1x128xf32>
      %32 = vector.shape_cast %29 : vector<1x128xf32> to vector<1x1x128xf32>
      tpu.vector_store %arg4[%c0_21, %c0_22, %c0_23], %32 {strides = array<i32>} : memref<1x2x128xf32, #tpu.memory_space<vmem>>, vector<1x1x128xf32>,
      %c0_24 = arith.constant 0 : index
      %c0_25 = arith.constant 0 : index
      %33 = vector.load %arg6[%c0_24, %c0_25] : memref<8x128xf32, #tpu.memory_space<vmem>>, vector<8x128xf32>
      %cst_26 = arith.constant dense<0.000000e+00> : vector<128xf32>
      %34 = vector.multi_reduction <add>, %33, %cst_26 [0] : vector<8x128xf32> to vector<128xf32>
      %35 = vector.shape_cast %34 : vector<128xf32> to vector<1x128xf32>
      %c0_27 = arith.constant 0 : index
      %c1 = arith.constant 1 : index
      %c0_28 = arith.constant 0 : index
      %36 = vector.load %arg4[%c0_27, %c1, %c0_28] : memref<1x2x128xf32, #tpu.memory_space<vmem>>, vector<1x1x128xf32>
      %37 = vector.shape_cast %36 : vector<1x1x128xf32> to vector<1x128xf32>
      %38 = vector.shape_cast %35 : vector<1x128xf32> to vector<1x1x128xf32>
      tpu.vector_store %arg4[%c0_27, %c1, %c0_28], %38 {strides = array<i32>} : memref<1x2x128xf32, #tpu.memory_space<vmem>>, vector<1x1x128xf32>,
    } else {
    }
    return
  }
  func.func @transform_0(%arg0: i32, %arg1: i32) -> (i32, i32) {
    %c1_i32 = arith.constant 1 : i32
    %0 = arith.muli %arg0, %c1_i32 : i32
    %1 = arith.addi %0, %arg1 : i32
    %c0_i32 = arith.constant 0 : i32
    %2 = arith.minsi %1, %c0_i32 : i32
    %c0_i32_0 = arith.constant 0 : i32
    %c0_i32_1 = arith.constant 0 : i32
    return %2, %c0_i32_0 : i32, i32
  }
  func.func @transform_1(%arg0: i32, %arg1: i32) -> (i32, i32) {
    %c1_i32 = arith.constant 1 : i32
    %0 = arith.muli %arg0, %c1_i32 : i32
    %1 = arith.addi %0, %arg1 : i32
    %c0_i32 = arith.constant 0 : i32
    %2 = arith.minsi %1, %c0_i32 : i32
    %c0_i32_0 = arith.constant 0 : i32
    %c0_i32_1 = arith.constant 0 : i32
    return %2, %c0_i32_0 : i32, i32
  }
  func.func @transform_2(%arg0: i32, %arg1: i32) -> (i32, i32, i32) {
    %c0_i32 = arith.constant 0 : i32
    %c0_i32_0 = arith.constant 0 : i32
    %c0_i32_1 = arith.constant 0 : i32
    return %arg0, %c0_i32, %c0_i32_0 : i32, i32, i32
  }
}

</mosaic_0001>

<llo_original>
// kernel: dice_loss.1
$region0: #{dice_loss.1}
  #allocation0 [shape = 'u32[]', space=smem, size = 0x4, offset = 0x4, fixed_abs, tag = 'smem constant byte address 0x4 - core index']
  #allocation1 [shape = 'u32[144,128]{1,0:T(1,128)}', space=vmem, size = 0x12000, scoped, tag = 'internal scratch']
  #allocation2 [shape = 'f32[8,128]{1,0:T(8,128)}', space=vmem, size = 0x1000, scoped, tag = 'scratch operand']
  #allocation3 [shape = 'f32[8,128]{1,0:T(8,128)}', space=vmem, size = 0x1000, scoped, tag = 'scratch operand']
  %s0 = inlined_call_operand.vmem [shape: f32[16,128], index: 0, kind: input, shape index: {}]
  %s1 = inlined_call_operand.vmem [shape: f32[16,128], index: 1, kind: input, shape index: {}]
  %s2 = inlined_call_operand.vmem [shape: f32[1,2,128], index: 2, kind: output, shape index: {}]
  %s3 = sld [smem:[#allocation0]]
  $region26: #{dice_loss.1} parent=0
    _
  %s5 = ssub.s32 1, %s3
  %s6 = scalar_select 0, %s5, %s3
  // Predicated region
  $region2: #{dice_loss.1} parent=0 // pred_check
    _
  $region3: #{dice_loss.1} parent=0 // pred_check_branch
    %8 = sbr.rel (0) target = $region5
  $region4: #{dice_loss.1} parent=0 // pred_region
    %s9 = sadd.s32 0, 0
    %p10 = scmp.lt.s32.totalorder %s9, 0
    %s11 = scalar_select %p10, %s9, 0
    %s12 = smul.u32 2, %s11
    %p13 = scmp.lt.s32.totalorder %s12, 1
    %s14 = scalar_select %p13, %s12, 1
    %s15 = smul.addr %s14, 8
    %s16 = scalar_lea.vmem %s0, %s15
    %s17 = sadd.s32 0, 0
    %p18 = scmp.lt.s32.totalorder %s17, 0
    %s19 = scalar_select %p18, %s17, 0
    %s20 = smul.u32 2, %s19
  $region5: #{dice_loss.1} parent=0 // pred_fallthru
    _
  // Predicated region
  $region6: #{dice_loss.1} parent=0 // pred_check
    _
  $region7: #{dice_loss.1} parent=0 // pred_check_branch
    %22 = sbr.rel (0) target = $region9
  $region8: #{dice_loss.1} parent=0 // pred_region
    %s23 = sadd.s32 0, 0
    %p24 = scmp.lt.s32.totalorder %s23, 0
    %s25 = scalar_select %p24, %s23, 0
    %s26 = smul.u32 2, %s25
    %p27 = scmp.lt.s32.totalorder %s26, 1
    %s28 = scalar_select %p27, %s26, 1
    %s29 = smul.addr %s28, 8
    %s30 = scalar_lea.vmem %s1, %s29
    %s31 = sadd.s32 0, 0
    %p32 = scmp.lt.s32.totalorder %s31, 0
    %s33 = scalar_select %p32, %s31, 0
    %s34 = smul.u32 2, %s33
  $region9: #{dice_loss.1} parent=0 // pred_fallthru
    _
  %s35 = sadd.s32 0, 0
  %p36 = scmp.lt.s32.totalorder %s35, 0
  %s37 = scalar_select %p36, %s35, 0
  %s38 = smul.u32 2, %s37
  %p39 = scmp.lt.s32.totalorder %s38, 1
  %s40 = scalar_select %p39, %s38, 1
  %s41 = smul.addr %s40, 8
  %s42 = scalar_lea.vmem %s0, %s41
  %s43 = sadd.s32 0, 0
  %p44 = scmp.lt.s32.totalorder %s43, 0
  %s45 = scalar_select %p44, %s43, 0
  %s46 = smul.u32 2, %s45
  %p47 = scmp.lt.s32.totalorder %s46, 1
  %s48 = scalar_select %p47, %s46, 1
  %s49 = smul.addr %s48, 8
  %s50 = scalar_lea.vmem %s1, %s49
  %s51 = sadd.s32 0, 0
  %p52 = scmp.lt.s32.totalorder %s51, 0
  %s53 = scalar_select %p52, %s51, 0
  %s54 = smul.u32 2, %s53
  %p55 = scmp.lt.s32.totalorder %s54, 1
  %s56 = scalar_select %p55, %s54, 1
  %s57 = smul.addr %s56, 8
  %s58 = scalar_lea.vmem %s0, %s57
  %s59 = sadd.s32 0, 0
  %p60 = scmp.lt.s32.totalorder %s59, 0
  %s61 = scalar_select %p60, %s59, 0
  %s62 = smul.u32 2, %s61
  %s63 = sadd.s32 0, 0
  %p64 = scmp.lt.s32.totalorder %s63, 0
  %s65 = scalar_select %p64, %s63, 0
  %s66 = smul.u32 2, %s65
  %p67 = scmp.lt.s32.totalorder %s66, 1
  %s68 = scalar_select %p67, %s66, 1
  %s69 = smul.addr %s68, 8
  %s70 = scalar_lea.vmem %s1, %s69
  %s71 = sadd.s32 0, 0
  %p72 = scmp.lt.s32.totalorder %s71, 0
  %s73 = scalar_select %p72, %s71, 0
  %s74 = smul.u32 2, %s73
  %p75 = scmp.eq.s32.totalorder 0, 0
  // Predicated region
  $region10: #{dice_loss.1} parent=0 // pred_check
    %p76 = pneg %p75
  $region11: #{dice_loss.1} parent=0 // pred_check_branch
    %78 = sbr.rel (%p76) target = $region13
  $region12: #{dice_loss.1} parent=0 // pred_region
    %79 = vst [vmem:[#allocation2] sm:$0xff] 0.0
    %80 = vst [vmem:[#allocation3] sm:$0xff] 0.0
  $region13: #{dice_loss.1} parent=0 // pred_fallthru
    _
  %v81 = vld [vmem:[%s58] sm:$0xff]
  %v82 = vld [vmem:[%s58 + $0x8] sm:$0xff]
  %v83 = vmul.f32 %v81, 0.5
  %v84 = vmul.f32 %v82, 0.5
  %v85 = vtanh.pop %v83
  %v86 = vtanh.pop %v84
  %v87 = vadd.f32 %v85, 1.0
  %v88 = vadd.f32 %v86, 1.0
  %v89 = vmul.f32 %v87, 0.5
  %v90 = vmul.f32 %v88, 0.5
  %v91 = vld [vmem:[%s70] sm:$0xff]
  %v92 = vld [vmem:[%s70 + $0x8] sm:$0xff]
  %v93 = vmul.f32 %v89, %v91
  %v94 = vmul.f32 %v90, %v92
  %v95 = vadd.f32 %v89, %v91
  %v96 = vadd.f32 %v90, %v92
  %v97 = vld [vmem:[#allocation2] sm:$0xff]
  %v98 = vadd.f32 %v93, %v94
  %v99 = vadd.f32 %v97, %v98
  %100 = vst [vmem:[#allocation2] sm:$0xff] %v99
  %v101 = vld [vmem:[#allocation3] sm:$0xff]
  %v102 = vadd.f32 %v95, %v96
  %v103 = vadd.f32 %v101, %v102
  %104 = vst [vmem:[#allocation3] sm:$0xff] %v103
  // Predicated region
  $region14: #{dice_loss.1} parent=0 // pred_check
    %p105 = pneg %p75
  $region15: #{dice_loss.1} parent=0 // pred_check_branch
    %107 = sbr.rel (%p105) target = $region17
  $region16: #{dice_loss.1} parent=0 // pred_region
    %v108 = vld [vmem:[#allocation2] sm:$0xff]
    %v109 = vrot.slane %v108, 4
    %v110 = vadd.f32 %v108, %v109
    %v111 = vrot.slane %v110, 2
    %v112 = vadd.f32 %v110, %v111
    %v113 = vrot.slane %v112, 1
    %v114 = vadd.f32 %v112, %v113
    %115 = vst [vmem:[%s2] sm:$0x1] %v114
    %v116 = vld [vmem:[#allocation3] sm:$0xff]
    %v117 = vrot.slane %v116, 4
    %v118 = vadd.f32 %v116, %v117
    %v119 = vrot.slane %v118, 2
    %v120 = vadd.f32 %v118, %v119
    %v121 = vrot.slane %v120, 1
    %v122 = vadd.f32 %v120, %v121
    %123 = vst [vmem:[%s2 + $0x1] sm:$0x1] %v122
  $region17: #{dice_loss.1} parent=0 // pred_fallthru
    _
  // Predicated region
  $region18: #{dice_loss.1} parent=0 // pred_check
    _
  $region19: #{dice_loss.1} parent=0 // pred_check_branch
    %125 = sbr.rel (0) target = $region21
  $region20: #{dice_loss.1} parent=0 // pred_region
    _
  $region21: #{dice_loss.1} parent=0 // pred_fallthru
    _
  // Predicated region
  $region22: #{dice_loss.1} parent=0 // pred_check
    _
  $region23: #{dice_loss.1} parent=0 // pred_check_branch
    %127 = sbr.rel (0) target = $region25
  $region24: #{dice_loss.1} parent=0 // pred_region
    _
  $region25: #{dice_loss.1} parent=0 // pred_fallthru
    _

</llo_original>
